<compile_context>
chip_gen: v6e
topology: v6e:2x2x1
jax: 0.10.0
libtpu: 0.0.40
codegen_flags: <defaults>
</compile_context>

<pallas_src>
import functools

import jax
import jax.numpy as jnp
from jax import lax
from jax.experimental import pallas as pl
from jax.experimental.pallas import tpu as pltpu


def _round_up(x, m):
    return (x + m - 1) // m * m


def _conv_norm_act_kernel(x_ref, w_ref, p_ref, o_ref, xp_ref, slab_ref, *,
                          k, stride, w_in, head, h_out, w_out,
                          groups, eps, act, compute_dtype):
    """One grid step = `batch_tile` images.

    x_ref    : (batch_tile, Cin, H*W)      input dtype, raw row-flat input
    w_ref    : (Cout, k*k*Cin)             compute dtype, im2col-ordered weights
    p_ref    : (Cout, 4)                   f32, columns [bias, gamma, beta, alpha]
    o_ref    : (batch_tile, Cout, Ho*Wo)   out dtype, channels-first output
    xp_ref   : (Cin, Lx)                   compute dtype scratch, zero-margined flat input
    slab_ref : (k*k*Cin, Ho*Wo)            compute dtype scratch, im2col slab
    """
    batch_tile, cin, hw_in = x_ref.shape
    cout = o_ref.shape[1]
    hw_out = h_out * w_out
    lx = xp_ref.shape[1]
    pad = (k - 1) // 2
    cg = cout // groups
    fast = (stride == 1) and (w_out == w_in)      # canonical stride-1 / odd-k path

    # Per-channel parameters: channels on sublanes, broadcast over lanes.
    bias = p_ref[:, 0:1]
    gamma = p_ref[:, 1:2]
    beta = p_ref[:, 2:3]
    alpha = p_ref[:, 3:4]

    # ---- horizontal-padding masks (0/1 multipliers), hoisted out of the tap
    # ---- and batch loops; only taps whose column leaves the image need one.
    n_ocol = w_in if fast else w_out
    ocol = jax.lax.broadcasted_iota(jnp.int32, (1, hw_out), 1) % n_ocol
    masks = []
    for dx in range(k):
        lo_ok = dx >= pad
        hi_ok = (n_ocol - 1) * stride + dx < w_in + pad
        if lo_ok and hi_ok:
            masks.append(None)
        else:
            cpad = ocol * stride + dx             # column in padded coordinates
            valid = (cpad >= pad) & (cpad < w_in + pad)
            masks.append(valid.astype(jnp.float32).astype(compute_dtype))

    # Zero-margined input slab: the head/tail zero margins double as the
    # vertical (top/bottom) padding, so no jnp.pad pass in the wrapper.
    # Zeroed every step (scratch is per-core; do NOT gate on program_id==0).
    if head > 0 or lx > hw_in:
        xp_ref[...] = jnp.zeros(xp_ref.shape, xp_ref.dtype)

    inv_n = 1.0 / (cg * hw_out)
    base0 = head - pad * (w_in + 1)               # flat offset of tap (dy=0, dx=0)

    def process_image(b):
        # ---- stage the raw image (cast to compute dtype) at a lane-aligned offset
        xp_ref[:, head:head + hw_in] = x_ref[b].astype(compute_dtype)

        # ---- im2col: k*k lane-shifted (masked) slices -> one VMEM slab ----
        for dy in range(k):
            for dx in range(k):
                t = dy * k + dx
                off = base0 + dy * w_in + dx
                if fast:
                    xs = xp_ref[:, off:off + hw_out]            # pure lane shift
                else:
                    # TODO(synk): stride>1 / even-k pays one strided relayout per
                    # tap; a strided-DMA slab build would remove it.
                    win = xp_ref[:, off:off + h_out * stride * w_in]
                    xs = win.reshape(cin, h_out, stride * w_in)
                    xs = xs[:, :, :w_out * stride:stride].reshape(cin, hw_out)
                m = masks[dx]
                if m is not None:
                    xs = xs * m
                slab_ref[t * cin:(t + 1) * cin, :] = xs

        # ---- single MXU matmul over the full k*k*Cin contraction -----------
        y = jnp.dot(w_ref[...], slab_ref[...],
                    preferred_element_type=jnp.float32)         # (Cout, Ho*Wo) f32
        y = y + bias

        # ---- GroupNorm (per image), two-pass variance for stability --------
        ch_sum = jnp.sum(y, axis=1, keepdims=True)              # (Cout, 1)
        if cg == 1:
            mean_c = ch_sum * inv_n
        else:
            g_sum = jnp.sum(ch_sum.reshape(groups, cg), axis=1, keepdims=True)
            mean_c = jnp.broadcast_to(g_sum * inv_n, (groups, cg)).reshape(cout, 1)
        centered = y - mean_c
        ch_sq = jnp.sum(centered * centered, axis=1, keepdims=True)
        if cg == 1:
            var_c = ch_sq * inv_n
        else:
            g_sq = jnp.sum(ch_sq.reshape(groups, cg), axis=1, keepdims=True)
            var_c = jnp.broadcast_to(g_sq * inv_n, (groups, cg)).reshape(cout, 1)
        inv_c = jax.lax.rsqrt(var_c + eps)
        z = centered * (inv_c * gamma) + beta

        # ---- activation -----------------------------------------------------
        if act == 'prelu':
            z = jnp.where(z > 0, z, alpha * z)
        elif act == 'softplus':
            z = jax.nn.softplus(z)
        elif act == 'sigmoid':
            z = jax.nn.sigmoid(z)

        o_ref[b] = z.astype(o_ref.dtype)

    if batch_tile == 1:
        process_image(0)                          # static index, no dynamic slicing
    else:
        def body(b, carry):
            process_image(b)
            return carry
        lax.fori_loop(0, batch_tile, body, 0)     # not a Python unroll


def conv_norm_act(x_nchw, weight_oihw, bias, gamma, beta, alpha,
                  kernel_size, stride, act='prelu', eps=1e-5,
                  compute_dtype=jnp.bfloat16, out_dtype=None, batch_tile=None):
    """Pallas implementation of ConvNormAct.forward (inputs/outputs are NCHW)."""
    n, cin, h, w = x_nchw.shape
    cout = weight_oihw.shape[0]
    k = kernel_size
    pad = (k - 1) // 2
    h_out = (h + 2 * pad - k) // stride + 1
    w_out = (w + 2 * pad - k) // stride + 1
    hw_in = h * w
    hw_out = h_out * w_out
    groups = min(32, cout)
    assert cout % groups == 0, "GroupNorm needs Cout divisible by the group count"
    out_dtype = x_nchw.dtype if out_dtype is None else out_dtype

    # Zero-margined flat-slab geometry (margins = vertical padding; interior
    # store is lane-aligned via `head`).
    head = _round_up(pad * (w + 1), 128)
    lx = head + (k - 1 - pad) * (w + 1) + h_out * stride * w

    # Raw input, spatially flattened (metadata-only): padding and the compute
    # dtype cast happen inside the kernel, so no extra HBM pass over x here.
    x_flat = x_nchw.reshape(n, cin, hw_in)

    # Weights in im2col order: column (dy*k+dx)*Cin + c  <->  weight[o, c, dy, dx].
    w2d = jnp.transpose(weight_oihw, (0, 2, 3, 1)).reshape(cout, k * k * cin)
    w2d = w2d.astype(compute_dtype)

    # Fold the four per-channel vectors into a single (Cout, 4) constant block.
    params = jnp.stack([bias, gamma, beta, alpha], axis=1).astype(jnp.float32)

    # ---- per-generation VMEM budget and batch tile --------------------------
    cbytes = jnp.dtype(compute_dtype).itemsize
    xbytes = jnp.dtype(x_nchw.dtype).itemsize
    obytes = jnp.dtype(out_dtype).itemsize
    try:
        phys_vmem = int(getattr(pltpu.get_tpu_info(), "vmem_capacity_bytes", 64 << 20))
    except Exception:
        phys_vmem = 64 << 20
    cap = (phys_vmem * 3) // 4                    # headroom for compiler scratch/sems

    work_fixed = (cin * lx * cbytes                                   # xp scratch
                  + k * k * cin * hw_out * cbytes                     # im2col slab
                  + 2 * (cout * k * k * cin * cbytes + cout * 4 * 4)  # weights+params
                  + 4 * cout * hw_out * 4)                            # live f32 temps
    per_image = 2 * (cin * hw_in * xbytes + cout * hw_out * obytes)   # dbl-buffered blocks

    if batch_tile is None:
        budget = max(cap - work_fixed - (2 << 20), per_image)
        batch_tile = 1
        for bt in range(1, n + 1):
            if n % bt == 0 and bt * per_image <= budget and (n // bt >= 2 or n == 1):
                batch_tile = bt                   # keep >= 2 grid steps for megacore
    assert n % batch_tile == 0

    vmem_need = work_fixed + batch_tile * per_image + (2 << 20)
    vmem_limit = int(min(max(vmem_need, 16 << 20), cap))

    kernel = functools.partial(
        _conv_norm_act_kernel, k=k, stride=stride, w_in=w, head=head,
        h_out=h_out, w_out=w_out, groups=groups, eps=eps, act=act,
        compute_dtype=compute_dtype)

    out = pl.pallas_call(
        kernel,
        out_shape=jax.ShapeDtypeStruct((n, cout, hw_out), out_dtype),
        grid_spec=pltpu.PrefetchScalarGridSpec(
            num_scalar_prefetch=0,
            grid=(n // batch_tile,),
            in_specs=[
                pl.BlockSpec((batch_tile, cin, hw_in), lambda i: (i, 0, 0)),
                pl.BlockSpec((cout, k * k * cin), lambda i: (0, 0)),
                pl.BlockSpec((cout, 4), lambda i: (0, 0)),
            ],
            out_specs=pl.BlockSpec((batch_tile, cout, hw_out), lambda i: (i, 0, 0)),
            scratch_shapes=[
                pltpu.VMEM((cin, lx), compute_dtype),
                pltpu.VMEM((k * k * cin, hw_out), compute_dtype),
            ],
        ),
        compiler_params=pltpu.CompilerParams(
            dimension_semantics=("parallel",),
            vmem_limit_bytes=vmem_limit,
        ),
    )(x_flat, w2d, params)

    # Output is already channels-first: metadata-only reshape to NCHW.
    return out.reshape(n, cout, h_out, w_out)


def reference(x_nchw, weight_oihw, bias, gamma, beta, alpha,
              kernel_size, stride, act='prelu', eps=1e-5):
    """Pure-JAX reference with PyTorch semantics (f32, HIGHEST-precision conv)."""
    k = kernel_size
    pad = (k - 1) // 2
    cout = weight_oihw.shape[0]
    groups = min(32, cout)
    out = jax.lax.conv_general_dilated(
        x_nchw, weight_oihw, (stride, stride), [(pad, pad), (pad, pad)],
        dimension_numbers=('NCHW', 'OIHW', 'NCHW'),
        precision=jax.lax.Precision.HIGHEST)
    out = out + bias[None, :, None, None]
    n, c, ho, wo = out.shape
    xg = out.reshape(n, groups, c // groups, ho, wo)
    mean = xg.mean(axis=(2, 3, 4), keepdims=True)
    var = xg.var(axis=(2, 3, 4), keepdims=True)
    xn = ((xg - mean) * jax.lax.rsqrt(var + eps)).reshape(n, c, ho, wo)
    out = xn * gamma[None, :, None, None] + beta[None, :, None, None]
    if act == 'prelu':
        out = jnp.where(out > 0, out, alpha[None, :, None, None] * out)
    elif act == 'softplus':
        out = jax.nn.softplus(out)
    elif act == 'sigmoid':
        out = jax.nn.sigmoid(out)
    return out


if __name__ == "__main__":
    # ConvNormAct(input_channel=4, output_channel=8, kernel_size=3, stride=1, act='prelu')
    key = jax.random.PRNGKey(0)
    k_x, k_w, k_b = jax.random.split(key, 3)

    N, Cin, H, W = 2, 4, 16, 16
    Cout, K, STRIDE = 8, 3, 1

    x = jax.random.normal(k_x, (N, Cin, H, W), dtype=jnp.float32)
    weight = jax.random.normal(k_w, (Cout, Cin, K, K), dtype=jnp.float32) * 0.1
    bias = jax.random.normal(k_b, (Cout,), dtype=jnp.float32) * 0.1
    gamma = jnp.ones((Cout,), dtype=jnp.float32)        # GroupNorm weight init
    beta = jnp.zeros((Cout,), dtype=jnp.float32)        # GroupNorm bias init
    alpha = jnp.full((Cout,), 0.25, dtype=jnp.float32)  # PReLU default init

    out = conv_norm_act(x, weight, bias, gamma, beta, alpha, K, STRIDE, act='prelu')
    out = jax.block_until_ready(out)

    # The kernel feeds the MXU bf16 inputs (f32 accumulation).  Compare against
    # an f32 reference run on identically bf16-quantized inputs so the check
    # verifies the kernel logic itself (only accumulation-order noise remains).
    xq = x.astype(jnp.bfloat16).astype(jnp.float32)
    wq = weight.astype(jnp.bfloat16).astype(jnp.float32)
    ref = reference(xq, wq, bias, gamma, beta, alpha, K, STRIDE, act='prelu')

    assert out.shape == ref.shape == (N, Cout, H, W)
    assert jnp.allclose(out, ref, atol=1e-3, rtol=1e-3), "mismatch vs reference"

    print("KERNEL_OK")
</pallas_src>

<mosaic_0001>
module attributes {stable_mosaic.version = 11 : i64} {
  func.func @_conv_norm_act_kernel(%arg0: i32, %arg1: memref<1x4x256xf32, #tpu.memory_space<vmem>>, %arg2: memref<8x36xbf16, #tpu.memory_space<vmem>>, %arg3: memref<8x4xf32, #tpu.memory_space<vmem>>, %arg4: memref<1x8x256xf32, #tpu.memory_space<vmem>>, %arg5: memref<4x401xbf16, #tpu.memory_space<vmem>>, %arg6: memref<36x256xbf16, #tpu.memory_space<vmem>>) attributes {dimension_semantics = [#tpu.dimension_semantics<parallel>], iteration_bounds = array<i64: 2>, scalar_prefetch = 0 : i64, scratch_operands = 2 : i64, tpu.core_type = #tpu.core_type<tc>, window_params = [{transform_indices = @transform_0, window_bounds = array<i64: 1, 4, 256>}, {pipeline_mode = #tpu.pipeline_mode<synchronous>, transform_indices = @transform_1, window_bounds = array<i64: 8, 36>}, {pipeline_mode = #tpu.pipeline_mode<synchronous>, transform_indices = @transform_2, window_bounds = array<i64: 8, 4>}, {transform_indices = @transform_3, window_bounds = array<i64: 1, 8, 256>}]} {
    %c0 = arith.constant 0 : index
    %c0_0 = arith.constant 0 : index
    %0 = vector.load %arg3[%c0, %c0_0] : memref<8x4xf32, #tpu.memory_space<vmem>>, vector<8x1xf32>
    %c0_1 = arith.constant 0 : index
    %c1 = arith.constant 1 : index
    %1 = vector.load %arg3[%c0_1, %c1] : memref<8x4xf32, #tpu.memory_space<vmem>>, vector<8x1xf32>
    %c0_2 = arith.constant 0 : index
    %c2 = arith.constant 2 : index
    %2 = vector.load %arg3[%c0_2, %c2] : memref<8x4xf32, #tpu.memory_space<vmem>>, vector<8x1xf32>
    %c0_3 = arith.constant 0 : index
    %c3 = arith.constant 3 : index
    %3 = vector.load %arg3[%c0_3, %c3] : memref<8x4xf32, #tpu.memory_space<vmem>>, vector<8x1xf32>
    %4 = tpu.iota {dimensions = array<i32: 1>} : vector<1x256xi32>
    %c16_i32 = arith.constant 16 : i32
    %c0_i32 = arith.constant 0 : i32
    %5 = arith.cmpi eq, %c16_i32, %c0_i32 : i32
    %c1_i32 = arith.constant 1 : i32
    %6 = arith.select %5, %c1_i32, %c16_i32 : i32
    %7 = vector.broadcast %6 : i32 to vector<1x256xi32>
    %8 = arith.remsi %4, %7 : vector<1x256xi32>
    %c0_i32_4 = arith.constant 0 : i32
    %9 = vector.broadcast %c0_i32_4 : i32 to vector<1x256xi32>
    %10 = arith.cmpi ne, %8, %9 : vector<1x256xi32>
    %c0_i32_5 = arith.constant 0 : i32
    %11 = vector.broadcast %c0_i32_5 : i32 to vector<1x256xi32>
    %12 = arith.cmpi slt, %8, %11 : vector<1x256xi32>
    %c0_i32_6 = arith.constant 0 : i32
    %13 = arith.cmpi slt, %6, %c0_i32_6 : i32
    %14 = vector.broadcast %13 : i1 to vector<1x256xi1>
    %15 = vector.broadcast %14 : vector<1x256xi1> to vector<1x256xi1>
    %16 = arith.xori %12, %15 : vector<1x256xi1>
    %17 = arith.andi %16, %10 : vector<1x256xi1>
    %18 = vector.broadcast %6 : i32 to vector<1x256xi32>
    %19 = arith.addi %8, %18 : vector<1x256xi32>
    %20 = arith.select %17, %19, %8 : vector<1x256xi1>, vector<1x256xi32>
    %c1_i32_7 = arith.constant 1 : i32
    %21 = vector.broadcast %c1_i32_7 : i32 to vector<1x256xi32>
    %22 = arith.muli %20, %21 : vector<1x256xi32>
    %c0_i32_8 = arith.constant 0 : i32
    %23 = vector.broadcast %c0_i32_8 : i32 to vector<1x256xi32>
    %24 = arith.addi %22, %23 : vector<1x256xi32>
    %c1_i32_9 = arith.constant 1 : i32
    %25 = vector.broadcast %c1_i32_9 : i32 to vector<1x256xi32>
    %26 = arith.cmpi sge, %24, %25 : vector<1x256xi32>
    %c17_i32 = arith.constant 17 : i32
    %27 = vector.broadcast %c17_i32 : i32 to vector<1x256xi32>
    %28 = arith.cmpi slt, %24, %27 : vector<1x256xi32>
    %29 = arith.andi %26, %28 : vector<1x256xi1>
    %30 = arith.extui %29 : vector<1x256xi1> to vector<1x256xi32>
    %31 = arith.sitofp %30 : vector<1x256xi32> to vector<1x256xf32>
    %32 = arith.truncf %31 : vector<1x256xf32> to vector<1x256xbf16>
    %c1_i32_10 = arith.constant 1 : i32
    %33 = vector.broadcast %c1_i32_10 : i32 to vector<1x256xi32>
    %34 = arith.muli %20, %33 : vector<1x256xi32>
    %c2_i32 = arith.constant 2 : i32
    %35 = vector.broadcast %c2_i32 : i32 to vector<1x256xi32>
    %36 = arith.addi %34, %35 : vector<1x256xi32>
    %c1_i32_11 = arith.constant 1 : i32
    %37 = vector.broadcast %c1_i32_11 : i32 to vector<1x256xi32>
    %38 = arith.cmpi sge, %36, %37 : vector<1x256xi32>
    %c17_i32_12 = arith.constant 17 : i32
    %39 = vector.broadcast %c17_i32_12 : i32 to vector<1x256xi32>
    %40 = arith.cmpi slt, %36, %39 : vector<1x256xi32>
    %41 = arith.andi %38, %40 : vector<1x256xi1>
    %42 = arith.extui %41 : vector<1x256xi1> to vector<1x256xi32>
    %43 = arith.sitofp %42 : vector<1x256xi32> to vector<1x256xf32>
    %44 = arith.truncf %43 : vector<1x256xf32> to vector<1x256xbf16>
    %cst = arith.constant 0.000000e+00 : bf16
    %45 = vector.broadcast %cst : bf16 to vector<4x401xbf16>
    %c0_13 = arith.constant 0 : index
    %c0_14 = arith.constant 0 : index
    %46 = vector.load %arg5[%c0_13, %c0_14] : memref<4x401xbf16, #tpu.memory_space<vmem>>, vector<4x401xbf16>
    tpu.vector_store %arg5[%c0_13, %c0_14], %45 {strides = array<i32>} : memref<4x401xbf16, #tpu.memory_space<vmem>>, vector<4x401xbf16>,
    %c0_15 = arith.constant 0 : index
    %c0_16 = arith.constant 0 : index
    %c0_17 = arith.constant 0 : index
    %47 = vector.load %arg1[%c0_15, %c0_16, %c0_17] : memref<1x4x256xf32, #tpu.memory_space<vmem>>, vector<1x4x256xf32>
    %48 = vector.shape_cast %47 : vector<1x4x256xf32> to vector<4x256xf32>
    %49 = arith.truncf %48 : vector<4x256xf32> to vector<4x256xbf16>
    %c0_18 = arith.constant 0 : index
    %c128 = arith.constant 128 : index
    %50 = vector.load %arg5[%c0_18, %c128] : memref<4x401xbf16, #tpu.memory_space<vmem>>, vector<4x256xbf16>
    tpu.vector_store %arg5[%c0_18, %c128], %49 {strides = array<i32>} : memref<4x401xbf16, #tpu.memory_space<vmem>>, vector<4x256xbf16>,
    %c0_19 = arith.constant 0 : index
    %c111 = arith.constant 111 : index
    %51 = vector.load %arg5[%c0_19, %c111] : memref<4x401xbf16, #tpu.memory_space<vmem>>, vector<4x256xbf16>
    %52 = vector.broadcast %32 : vector<1x256xbf16> to vector<4x256xbf16>
    %53 = arith.mulf %51, %52 : vector<4x256xbf16>
    %c0_20 = arith.constant 0 : index
    %c0_21 = arith.constant 0 : index
    %54 = vector.load %arg6[%c0_20, %c0_21] : memref<36x256xbf16, #tpu.memory_space<vmem>>, vector<4x256xbf16>
    tpu.vector_store %arg6[%c0_20, %c0_21], %53 {strides = array<i32>} : memref<36x256xbf16, #tpu.memory_space<vmem>>, vector<4x256xbf16>,
    %c0_22 = arith.constant 0 : index
    %c112 = arith.constant 112 : index
    %55 = vector.load %arg5[%c0_22, %c112] : memref<4x401xbf16, #tpu.memory_space<vmem>>, vector<4x256xbf16>
    %c4 = arith.constant 4 : index
    %c0_23 = arith.constant 0 : index
    %56 = vector.load %arg6[%c4, %c0_23] : memref<36x256xbf16, #tpu.memory_space<vmem>>, vector<4x256xbf16>
    tpu.vector_store %arg6[%c4, %c0_23], %55 {strides = array<i32>} : memref<36x256xbf16, #tpu.memory_space<vmem>>, vector<4x256xbf16>,
    %c0_24 = arith.constant 0 : index
    %c113 = arith.constant 113 : index
    %57 = vector.load %arg5[%c0_24, %c113] : memref<4x401xbf16, #tpu.memory_space<vmem>>, vector<4x256xbf16>
    %58 = vector.broadcast %44 : vector<1x256xbf16> to vector<4x256xbf16>
    %59 = arith.mulf %57, %58 : vector<4x256xbf16>
    %c8 = arith.constant 8 : index
    %c0_25 = arith.constant 0 : index
    %60 = vector.load %arg6[%c8, %c0_25] : memref<36x256xbf16, #tpu.memory_space<vmem>>, vector<4x256xbf16>
    tpu.vector_store %arg6[%c8, %c0_25], %59 {strides = array<i32>} : memref<36x256xbf16, #tpu.memory_space<vmem>>, vector<4x256xbf16>,
    %c0_26 = arith.constant 0 : index
    %c127 = arith.constant 127 : index
    %61 = vector.load %arg5[%c0_26, %c127] : memref<4x401xbf16, #tpu.memory_space<vmem>>, vector<4x256xbf16>
    %62 = vector.broadcast %32 : vector<1x256xbf16> to vector<4x256xbf16>
    %63 = arith.mulf %61, %62 : vector<4x256xbf16>
    %c12 = arith.constant 12 : index
    %c0_27 = arith.constant 0 : index
    %64 = vector.load %arg6[%c12, %c0_27] : memref<36x256xbf16, #tpu.memory_space<vmem>>, vector<4x256xbf16>
    tpu.vector_store %arg6[%c12, %c0_27], %63 {strides = array<i32>} : memref<36x256xbf16, #tpu.memory_space<vmem>>, vector<4x256xbf16>,
    %c0_28 = arith.constant 0 : index
    %c128_29 = arith.constant 128 : index
    %65 = vector.load %arg5[%c0_28, %c128_29] : memref<4x401xbf16, #tpu.memory_space<vmem>>, vector<4x256xbf16>
    %c16 = arith.constant 16 : index
    %c0_30 = arith.constant 0 : index
    %66 = vector.load %arg6[%c16, %c0_30] : memref<36x256xbf16, #tpu.memory_space<vmem>>, vector<4x256xbf16>
    tpu.vector_store %arg6[%c16, %c0_30], %65 {strides = array<i32>} : memref<36x256xbf16, #tpu.memory_space<vmem>>, vector<4x256xbf16>,
    %c0_31 = arith.constant 0 : index
    %c129 = arith.constant 129 : index
    %67 = vector.load %arg5[%c0_31, %c129] : memref<4x401xbf16, #tpu.memory_space<vmem>>, vector<4x256xbf16>
    %68 = vector.broadcast %44 : vector<1x256xbf16> to vector<4x256xbf16>
    %69 = arith.mulf %67, %68 : vector<4x256xbf16>
    %c20 = arith.constant 20 : index
    %c0_32 = arith.constant 0 : index
    %70 = vector.load %arg6[%c20, %c0_32] : memref<36x256xbf16, #tpu.memory_space<vmem>>, vector<4x256xbf16>
    tpu.vector_store %arg6[%c20, %c0_32], %69 {strides = array<i32>} : memref<36x256xbf16, #tpu.memory_space<vmem>>, vector<4x256xbf16>,
    %c0_33 = arith.constant 0 : index
    %c143 = arith.constant 143 : index
    %71 = vector.load %arg5[%c0_33, %c143] : memref<4x401xbf16, #tpu.memory_space<vmem>>, vector<4x256xbf16>
    %72 = vector.broadcast %32 : vector<1x256xbf16> to vector<4x256xbf16>
    %73 = arith.mulf %71, %72 : vector<4x256xbf16>
    %c24 = arith.constant 24 : index
    %c0_34 = arith.constant 0 : index
    %74 = vector.load %arg6[%c24, %c0_34] : memref<36x256xbf16, #tpu.memory_space<vmem>>, vector<4x256xbf16>
    tpu.vector_store %arg6[%c24, %c0_34], %73 {strides = array<i32>} : memref<36x256xbf16, #tpu.memory_space<vmem>>, vector<4x256xbf16>,
    %c0_35 = arith.constant 0 : index
    %c144 = arith.constant 144 : index
    %75 = vector.load %arg5[%c0_35, %c144] : memref<4x401xbf16, #tpu.memory_space<vmem>>, vector<4x256xbf16>
    %c28 = arith.constant 28 : index
    %c0_36 = arith.constant 0 : index
    %76 = vector.load %arg6[%c28, %c0_36] : memref<36x256xbf16, #tpu.memory_space<vmem>>, vector<4x256xbf16>
    tpu.vector_store %arg6[%c28, %c0_36], %75 {strides = array<i32>} : memref<36x256xbf16, #tpu.memory_space<vmem>>, vector<4x256xbf16>,
    %c0_37 = arith.constant 0 : index
    %c145 = arith.constant 145 : index
    %77 = vector.load %arg5[%c0_37, %c145] : memref<4x401xbf16, #tpu.memory_space<vmem>>, vector<4x256xbf16>
    %78 = vector.broadcast %44 : vector<1x256xbf16> to vector<4x256xbf16>
    %79 = arith.mulf %77, %78 : vector<4x256xbf16>
    %c32 = arith.constant 32 : index
    %c0_38 = arith.constant 0 : index
    %80 = vector.load %arg6[%c32, %c0_38] : memref<36x256xbf16, #tpu.memory_space<vmem>>, vector<4x256xbf16>
    tpu.vector_store %arg6[%c32, %c0_38], %79 {strides = array<i32>} : memref<36x256xbf16, #tpu.memory_space<vmem>>, vector<4x256xbf16>,
    %c0_39 = arith.constant 0 : index
    %c0_40 = arith.constant 0 : index
    %81 = vector.load %arg2[%c0_39, %c0_40] : memref<8x36xbf16, #tpu.memory_space<vmem>>, vector<8x36xbf16>
    %c0_41 = arith.constant 0 : index
    %c0_42 = arith.constant 0 : index
    %82 = vector.load %arg6[%c0_41, %c0_42] : memref<36x256xbf16, #tpu.memory_space<vmem>>, vector<36x256xbf16>
    %cst_43 = arith.constant dense<0.000000e+00> : vector<8x256xf32>
    %83 = tpu.matmul %81, %82, %cst_43 {dimension_numbers = #tpu.dot_dimension_numbers<[1], [0], [0], [1], [0, 0, 1, 1], [], []>} : vector<8x36xbf16>, vector<36x256xbf16>, vector<8x256xf32> -> vector<8x256xf32>
    %84 = vector.broadcast %0 : vector<8x1xf32> to vector<8x256xf32>
    %85 = arith.addf %83, %84 : vector<8x256xf32>
    %cst_44 = arith.constant dense<0.000000e+00> : vector<8xf32>
    %86 = vector.multi_reduction <add>, %85, %cst_44 [1] : vector<8x256xf32> to vector<8xf32>
    %87 = vector.shape_cast %86 : vector<8xf32> to vector<8x1xf32>
    %cst_45 = arith.constant 3.906250e-03 : f32
    %88 = vector.broadcast %cst_45 : f32 to vector<8x1xf32>
    %89 = arith.mulf %87, %88 : vector<8x1xf32>
    %90 = vector.broadcast %89 : vector<8x1xf32> to vector<8x256xf32>
    %91 = arith.subf %85, %90 : vector<8x256xf32>
    %92 = arith.mulf %91, %91 : vector<8x256xf32>
    %cst_46 = arith.constant dense<0.000000e+00> : vector<8xf32>
    %93 = vector.multi_reduction <add>, %92, %cst_46 [1] : vector<8x256xf32> to vector<8xf32>
    %94 = vector.shape_cast %93 : vector<8xf32> to vector<8x1xf32>
    %cst_47 = arith.constant 3.906250e-03 : f32
    %95 = vector.broadcast %cst_47 : f32 to vector<8x1xf32>
    %96 = arith.mulf %94, %95 : vector<8x1xf32>
    %cst_48 = arith.constant 9.99999974E-6 : f32
    %97 = vector.broadcast %cst_48 : f32 to vector<8x1xf32>
    %98 = arith.addf %96, %97 : vector<8x1xf32>
    %99 = math.rsqrt %98 : vector<8x1xf32>
    %100 = arith.mulf %99, %1 : vector<8x1xf32>
    %101 = vector.broadcast %100 : vector<8x1xf32> to vector<8x256xf32>
    %102 = arith.mulf %91, %101 : vector<8x256xf32>
    %103 = vector.broadcast %2 : vector<8x1xf32> to vector<8x256xf32>
    %104 = arith.addf %102, %103 : vector<8x256xf32>
    %cst_49 = arith.constant 0.000000e+00 : f32
    %105 = vector.broadcast %cst_49 : f32 to vector<8x256xf32>
    %106 = arith.cmpf ogt, %104, %105 : vector<8x256xf32>
    %107 = vector.broadcast %3 : vector<8x1xf32> to vector<8x256xf32>
    %108 = arith.mulf %107, %104 : vector<8x256xf32>
    %109 = arith.select %106, %104, %108 : vector<8x256xi1>, vector<8x256xf32>
    %c0_50 = arith.constant 0 : index
    %c0_51 = arith.constant 0 : index
    %c0_52 = arith.constant 0 : index
    %110 = vector.load %arg4[%c0_50, %c0_51, %c0_52] : memref<1x8x256xf32, #tpu.memory_space<vmem>>, vector<1x8x256xf32>
    %111 = vector.shape_cast %110 : vector<1x8x256xf32> to vector<8x256xf32>
    %112 = vector.shape_cast %109 : vector<8x256xf32> to vector<1x8x256xf32>
    tpu.vector_store %arg4[%c0_50, %c0_51, %c0_52], %112 {strides = array<i32>} : memref<1x8x256xf32, #tpu.memory_space<vmem>>, vector<1x8x256xf32>,
    return
  }
  func.func @transform_0(%arg0: i32) -> (i32, i32, i32) {
    %c0_i32 = arith.constant 0 : i32
    %c0_i32_0 = arith.constant 0 : i32
    %c0_i32_1 = arith.constant 0 : i32
    return %arg0, %c0_i32, %c0_i32_0 : i32, i32, i32
  }
  func.func @transform_1(%arg0: i32) -> (i32, i32) {
    %c0_i32 = arith.constant 0 : i32
    %c0_i32_0 = arith.constant 0 : i32
    %c0_i32_1 = arith.constant 0 : i32
    return %c0_i32, %c0_i32_0 : i32, i32
  }
  func.func @transform_2(%arg0: i32) -> (i32, i32) {
    %c0_i32 = arith.constant 0 : i32
    %c0_i32_0 = arith.constant 0 : i32
    %c0_i32_1 = arith.constant 0 : i32
    return %c0_i32, %c0_i32_0 : i32, i32
  }
  func.func @transform_3(%arg0: i32) -> (i32, i32, i32) {
    %c0_i32 = arith.constant 0 : i32
    %c0_i32_0 = arith.constant 0 : i32
    %c0_i32_1 = arith.constant 0 : i32
    return %arg0, %c0_i32, %c0_i32_0 : i32, i32, i32
  }
}

</mosaic_0001>

<llo_original>
// kernel: tpu_custom_call.1
$region0: #{tpu_custom_call.1}
  #allocation0 [shape = 'u32[]', space=smem, size = 0x4, offset = 0x4, fixed_abs, tag = 'smem constant byte address 0x4 - core index']
  #allocation1 [shape = 'u32[144,128]{1,0:T(1,128)}', space=vmem, size = 0x12000, scoped, tag = 'internal scratch']
  #allocation2 [shape = 'bf16[4,401]{1,0:T(4,128)(2,1)}', space=vmem, size = 0x1000, scoped, tag = 'scratch operand']
  #allocation3 [shape = 'bf16[36,256]{1,0:T(8,128)(2,1)}', space=vmem, size = 0x5000, scoped, tag = 'scratch operand']
  %s0 = inlined_call_operand.hbm [shape: f32[2,4,256], index: 0, kind: input, shape index: {}]
  %s1 = inlined_call_operand.vmem [shape: bf16[8,36], index: 1, kind: input, shape index: {}]
  %s2 = inlined_call_operand.vmem [shape: f32[8,4], index: 2, kind: input, shape index: {}]
  %s3 = inlined_call_operand.hbm [shape: f32[2,8,256], index: 3, kind: output, shape index: {}]
  %s4 = sld [smem:[#allocation0]]
  $region49: #{tpu_custom_call.1} parent=0
    _
  %s6 = ssub.s32 1, %s4
  %s7 = scalar_select 0, %s6, %s4
  $region1: #{tpu_custom_call.1} parent=0
    #allocation4 [shape = 'u8[8192]{0}', space=vmem, size = 0x2000, scoped, tag = 'input window, operand 0']
    #allocation5 [shape = 's32[2]{0}', space=sflag, size = 0x8, scoped, tag = 'scoped memory for tpu_custom_call.1']
    #allocation6 [shape = 's32[2]{0}', space=sflag, size = 0x8, scoped, tag = 'scoped memory for tpu_custom_call.1']
    #allocation7 [shape = 'u8[16384]{0}', space=vmem, size = 0x4000, scoped, tag = 'output window, operand 0']
    %8 = vsyncpa [#allocation5], 0
    %s9 = scalar_lea.sflag [#allocation5], 1
    %10 = vsyncpa %s9, 0
    %11 = vsyncpa [#allocation6], 0
    %s12 = scalar_lea.sflag [#allocation6], 1
    %13 = vsyncpa %s12, 0
    loop: start=0, step=1, limit=4
    $region2: #{tpu_custom_call.1} parent=1 // loop_pre_header
      _
    $region3: #{tpu_custom_call.1} parent=1 // loop_header
      %s15 = sphi 0, %s19
      %p16 = scmp.ge.s32.totalorder %s15, 4
      %s25 = sphi 0, %s27
      %s28 = sphi 0, %s25
      %s29 = sphi 0, %s28
      %s45 = sphi 0, %s29
      %s49 = sphi 0, %s49
      %s51 = sphi 0, %s49
      %s52 = sphi 0, %s51
      %s66 = sphi 0, %s52
      %s70 = sphi 0, %s70
      %s72 = sphi 0, %s70
      %s73 = sphi 0, %s72
      %s87 = sphi 0, %s73
      %s93 = sphi 0, %s95
      %s96 = sphi 0, %s93
      %s97 = sphi 0, %s96
      %s113 = sphi 0, %s97
    $region4: #{tpu_custom_call.1} parent=1 // loop_header_branch
      %18 = sbr.rel (%p16) target = $region8
    $region5: #{tpu_custom_call.1} parent=1 // loop_body
      %s20 = ssub.s32 %s15, 1
      %s21 = ssub.s32 %s15, 2
      %s22 = sadd.s32 %s15, 1
      %s23 = ssub.s32 %s15, %s22
      %p24 = scmp.eq.s32.totalorder %s23, 0
      %s26 = sadd.s32 %s25, 1
      %s27 = scalar_select %p24, %s25, %s26
      %p30 = pneg %p24
      %p31 = scmp.eq.s32.totalorder %s15, 1
      %p32 = por %p30, %p31
      %p33 = scmp.ne.s32.totalorder %s25, %s28
      %p34 = scmp.eq.s32.totalorder %s15, 0
      %p35 = por %p33, %p34
      %p36 = scmp.ne.s32.totalorder %s25, %s28
      %p37 = scmp.eq.s32.totalorder %s20, 1
      %p38 = por %p36, %p37
      %p39 = scmp.ne.s32.totalorder %s28, %s29
      %p40 = scmp.eq.s32.totalorder %s20, 0
      %p41 = por %p39, %p40
      %p42 = scmp.ne.s32.totalorder %s28, %s29
      %p43 = scmp.eq.s32.totalorder %s21, 1
      %p44 = por %p42, %p43
      %p46 = scmp.ne.s32.totalorder %s29, %s45
      %p47 = scmp.eq.s32.totalorder %s21, 0
      %p48 = por %p46, %p47
      %s50 = sadd.s32 %s49, 1
      %p53 = scmp.eq.s32.totalorder %s15, 1
      %p54 = scmp.ne.s32.totalorder %s49, %s51
      %p55 = scmp.eq.s32.totalorder %s15, 0
      %p56 = por %p54, %p55
      %p57 = scmp.ne.s32.totalorder %s49, %s51
      %p58 = scmp.eq.s32.totalorder %s20, 1
      %p59 = por %p57, %p58
      %p60 = scmp.ne.s32.totalorder %s51, %s52
      %p61 = scmp.eq.s32.totalorder %s20, 0
      %p62 = por %p60, %p61
      %p63 = scmp.ne.s32.totalorder %s51, %s52
      %p64 = scmp.eq.s32.totalorder %s21, 1
      %p65 = por %p63, %p64
      %p67 = scmp.ne.s32.totalorder %s52, %s66
      %p68 = scmp.eq.s32.totalorder %s21, 0
      %p69 = por %p67, %p68
      %s71 = sadd.s32 %s70, 1
      %p74 = scmp.eq.s32.totalorder %s15, 1
      %p75 = scmp.ne.s32.totalorder %s70, %s72
      %p76 = scmp.eq.s32.totalorder %s15, 0
      %p77 = por %p75, %p76
      %p78 = scmp.ne.s32.totalorder %s70, %s72
      %p79 = scmp.eq.s32.totalorder %s20, 1
      %p80 = por %p78, %p79
      %p81 = scmp.ne.s32.totalorder %s72, %s73
      %p82 = scmp.eq.s32.totalorder %s20, 0
      %p83 = por %p81, %p82
      %p84 = scmp.ne.s32.totalorder %s72, %s73
      %p85 = scmp.eq.s32.totalorder %s21, 1
      %p86 = por %p84, %p85
      %p88 = scmp.ne.s32.totalorder %s73, %s87
      %p89 = scmp.eq.s32.totalorder %s21, 0
      %p90 = por %p88, %p89
      %s91 = ssub.s32 %s15, %s22
      %p92 = scmp.eq.s32.totalorder %s91, 0
      %s94 = sadd.s32 %s93, 1
      %s95 = scalar_select %p92, %s93, %s94
      %p98 = pneg %p92
      %p99 = scmp.eq.s32.totalorder %s15, 1
      %p100 = por %p98, %p99
      %p101 = scmp.ne.s32.totalorder %s93, %s96
      %p102 = scmp.eq.s32.totalorder %s15, 0
      %p103 = por %p101, %p102
      %p104 = scmp.ne.s32.totalorder %s93, %s96
      %p105 = scmp.eq.s32.totalorder %s20, 1
      %p106 = por %p104, %p105
      %p107 = scmp.ne.s32.totalorder %s96, %s97
      %p108 = scmp.eq.s32.totalorder %s20, 0
      %p109 = por %p107, %p108
      %p110 = scmp.ne.s32.totalorder %s96, %s97
      %p111 = scmp.eq.s32.totalorder %s21, 1
      %p112 = por %p110, %p111
      %p114 = scmp.ne.s32.totalorder %s97, %s113
      %p115 = scmp.eq.s32.totalorder %s21, 0
      %p116 = por %p114, %p115
      %p117 = scmp.le.s32.totalorder 1, %s15
      %p118 = scmp.lt.s32.totalorder %s15, 3
      %p119 = pnand %p117, %p118
      %p120 = pneg %p119
      // Predicated region
      $region9: #{tpu_custom_call.1} parent=5 // pred_check
        _
      $region10: #{tpu_custom_call.1} parent=5 // pred_check_branch
        %122 = sbr.rel (%p119) target = $region12
      $region11: #{tpu_custom_call.1} parent=5 // pred_region
        %s123 = ssub.s32 %s15, 1
        // Predicated region
        $region13: #{tpu_custom_call.1} parent=11 // pred_check
          %p124 = pneg %p62
        $region14: #{tpu_custom_call.1} parent=11 // pred_check_branch
          %126 = sbr.rel (%p124) target = $region16
        $region15: #{tpu_custom_call.1} parent=11 // pred_region
          _
        $region16: #{tpu_custom_call.1} parent=11 // pred_fallthru
          _
        // Predicated region
        $region17: #{tpu_custom_call.1} parent=11 // pred_check
          %p127 = pneg %p83
        $region18: #{tpu_custom_call.1} parent=11 // pred_check_branch
          %129 = sbr.rel (%p127) target = $region20
        $region19: #{tpu_custom_call.1} parent=11 // pred_region
          _
        $region20: #{tpu_custom_call.1} parent=11 // pred_fallthru
          _
      $region12: #{tpu_custom_call.1} parent=5 // pred_fallthru
        _
      %p130 = scmp.lt.s32.totalorder %s15, 2
      // Predicated region
      $region21: #{tpu_custom_call.1} parent=5 // pred_check
        %p131 = pneg %p130
      $region22: #{tpu_custom_call.1} parent=5 // pred_check_branch
        %133 = sbr.rel (%p131) target = $region24
      $region23: #{tpu_custom_call.1} parent=5 // pred_region
        // Predicated region
        $region25: #{tpu_custom_call.1} parent=23 // pred_check
          %p134 = pneg %p35
        $region26: #{tpu_custom_call.1} parent=23 // pred_check_branch
          %136 = sbr.rel (%p134) target = $region28
        $region27: #{tpu_custom_call.1} parent=23 // pred_region
          %s137 = sand.u32 %s25, 1
          %s138 = scalar_lea.sflag [#allocation5], %s137
          %s139 = sand.u32 %s25, 1
          %s140 = smul.addr %s139, 8
          %s141 = scalar_lea.vmem [#allocation4], %s140
          %s143 = ssub.s32 128, 128
          %144 = vsyncadd %s138, %s143
          %s145 = smul.addr %s15, 2
          %s146 = smul.addr %s145, 64
          %s147 = scalar_lea.hbm %s0, %s146
          %s149 = sshll.u32 %s141, 4
          %s150 = int_to_ptr.vmem [resolvable:$true] %s149
          %152 = dma.hbm_to_vmem [thread:$0]  %s147, 128, %s150, %s138
        $region28: #{tpu_custom_call.1} parent=23 // pred_fallthru
          _
      $region24: #{tpu_custom_call.1} parent=5 // pred_fallthru
        _
      %p153 = scmp.le.s32.totalorder 1, %s15
      %p154 = scmp.lt.s32.totalorder %s15, 3
      %p155 = pnand %p153, %p154
      %p156 = pneg %p155
      // Predicated region
      $region29: #{tpu_custom_call.1} parent=5 // pred_check
        _
      $region30: #{tpu_custom_call.1} parent=5 // pred_check_branch
        %158 = sbr.rel (%p155) target = $region32
      $region31: #{tpu_custom_call.1} parent=5 // pred_region
        %s159 = ssub.s32 %s15, 1
        %s160 = sand.u32 %s28, 1
        %s161 = scalar_lea.sflag [#allocation5], %s160
        %s162 = sand.u32 %s28, 1
        %s163 = smul.addr %s162, 8
        %s164 = scalar_lea.vmem [#allocation4], %s163
        // Predicated region
        $region33: #{tpu_custom_call.1} parent=31 // pred_check
          %p165 = pneg %p41
        $region34: #{tpu_custom_call.1} parent=31 // pred_check_branch
          %167 = sbr.rel (%p165) target = $region36
        $region35: #{tpu_custom_call.1} parent=31 // pred_region
          %168 = dma.done %s161, 128
        $region36: #{tpu_custom_call.1} parent=31 // pred_fallthru
          _
        %s169 = sand.u32 %s28, 1
        %s170 = scalar_lea.sflag [#allocation5], %s169
        %s171 = sand.u32 %s28, 1
        %s172 = smul.addr %s171, 8
        %s173 = scalar_lea.vmem [#allocation4], %s172
        %p174 = pneg %p41
        %p175 = pneg %p38
        %p176 = pneg %p62
        %p177 = pneg %p59
        %p178 = pneg %p83
        %p179 = pneg %p80
        %p180 = pneg %p109
        %p181 = pneg %p106
        %s182 = sand.u32 %s96, 1
        %s183 = scalar_lea.sflag [#allocation6], %s182
        %s184 = sand.u32 %s96, 1
        %s185 = smul.addr %s184, 16
        %s186 = scalar_lea.vmem [#allocation7], %s185
        %v188 = vld [vmem:[%s2] sm:$0xff]
        %v189 = vlaneseq
        %v190 = vand.u32 %v189, 127
        %v191 = vadd.s32 %v190, 128
        %vm192 = vcmp.lt.s32.totalorder %v190, 0
        %v193 = vsub.s32 0, %v190
        %v194 = vsel %vm192, %v193, %v190
        %v195 = vshrl.u32 %v194, 4
        %v196 = vand.u32 %v194, 15
        %v197 = vsub.s32 0, %v196
        %v198 = vsel %vm192, %v197, %v196
        %vm199 = vcmp.lt.s32.totalorder %v191, 0
        %v200 = vsub.s32 0, %v191
        %v201 = vsel %vm199, %v200, %v191
        %v202 = vshrl.u32 %v201, 4
        %v203 = vand.u32 %v201, 15
        %v204 = vsub.s32 0, %v203
        %v205 = vsel %vm199, %v204, %v203
        %vm206 = vcmp.ne.s32.totalorder %v198, 0
        %vm207 = vcmp.ne.s32.totalorder %v205, 0
        %vm208 = vcmp.lt.s32.totalorder %v198, 0
        %vm209 = vcmp.lt.s32.totalorder %v205, 0
        %vm210 = vmand %vm208, %vm206
        %vm211 = vmand %vm209, %vm207
        %v212 = vadd.s32 %v198, 16
        %v213 = vadd.s32 %v205, 16
        %v214 = vsel %vm210, %v212, %v198
        %v215 = vsel %vm211, %v213, %v205
        %vm216 = vcmp.ge.s32.totalorder %v214, 1
        %vm217 = vcmp.ge.s32.totalorder %v215, 1
        %vm218 = vcmp.lt.s32.totalorder %v214, 17
        %vm219 = vcmp.lt.s32.totalorder %v215, 17
        %vm220 = vmand %vm216, %vm218
        %vm221 = vmand %vm217, %vm219
        %v222 = vsel %vm220, 1, 0
        %v223 = vsel %vm221, 1, 0
        %v224 = vcvt.s32.f32 %v222
        %v225 = vcvt.s32.f32 %v223
        %v226 = vpack.c.bf16 %v224, %v224
        %v227 = vpack.c.bf16 %v225, %v225
        %v228 = vadd.s32 %v214, 2
        %v229 = vadd.s32 %v215, 2
        %vm230 = vcmp.ge.s32.totalorder %v228, 1
        %vm231 = vcmp.ge.s32.totalorder %v229, 1
        %vm232 = vcmp.lt.s32.totalorder %v228, 17
        %vm233 = vcmp.lt.s32.totalorder %v229, 17
        %vm234 = vmand %vm230, %vm232
        %vm235 = vmand %vm231, %vm233
        %v236 = vsel %vm234, 1, 0
        %v237 = vsel %vm235, 1, 0
        %v238 = vcvt.s32.f32 %v236
        %v239 = vcvt.s32.f32 %v237
        %v240 = vpack.c.bf16 %v238, %v238
        %v241 = vpack.c.bf16 %v239, %v239
        %vm242 = vcmask 1041408
        %vm243 = vcmask 1043458
        %vm244 = vmor %vm243, %vm242
        %vm245 = vcmask 1045508
        %vm246 = vmor %vm245, %vm244
        %vm247 = vcmask 138246
        %vm248 = vmor %vm247, %vm246
        %249 = vst.msk [vmem:[#allocation2] sm:$0xff] %vm248, 0
        %v250 = vld [vmem:[%s164] sm:$0xff]
        %v252 = vcombine.high %v250, %v250
        %v254 = vpack.c.bf16 %v250, %v250
        %v255 = vpack.c.bf16 %v252, %v252
        %v258 = vcombine.low %v254, %v255
        %v260 = vunpack.c.l.s4 1983009808
        %v261 = vunpack.c.0.s8 %v260
        %v262 = vlaneseq
        %v263 = vshrl.u32 %v262, 7
        %v264 = vsub.s32 %v261, %v263
        %v265 = vrot.slane %v258, %v264
        %267 = vst [vmem:[#allocation2 + $0x2] sm:$0xf] %v265
        %v268 = vld [vmem:[#allocation2] sm:$0x3f]
        %v271 = vcombine.low %v226, %v227
        %v273 = vunpack.c.l.s4 1983009808
        %v274 = vunpack.c.0.s8 %v273
        %v275 = vlaneseq
        %v276 = vshrl.u32 %v275, 7
        %v277 = vsub.s32 %v274, %v276
        %v278 = vrot.slane %v271, %v277
        %279 = vrot.lane.b32.xlu0 %v278, 111
        %v280 = vpop.permute.xlu0 %279
        %v281 = vrot.slane %v280, 6
        %vm282 = vcmask 908288
        %v283 = vsel %vm282, %v281, %v280
        %v285 = vmul.bf16 %v268, %v283
        %v287 = vcombine.high %v285, %v285
        %v289 = vunpack.c.l.s4 1983009808
        %v290 = vunpack.c.0.s8 %v289
        %v291 = vlaneseq
        %v292 = vshrl.u32 %v291, 7
        %v293 = vsub.s32 %v290, %v292
        %v294 = vrot.slane %v285, %v293
        %v296 = vunpack.c.l.s4 1983009808
        %v297 = vunpack.c.0.s8 %v296
        %v298 = vlaneseq
        %v299 = vshrl.u32 %v298, 7
        %v300 = vsub.s32 %v297, %v299
        %v301 = vrot.slane %v287, %v300
        %302 = vrot.lane.b32.xlu0 %v294, 17
        %v303 = vpop.permute.xlu0 %302
        %304 = vrot.lane.b32.xlu0 %v301, 17
        %v305 = vpop.permute.xlu0 %304
        %v306 = vrot.slane %v303, 4
        %v307 = vrot.slane %v305, 4
        %vm308 = vcmask 1043456
        %v309 = vsel %vm308, %v306, %v307
        %vm310 = vcmask 138240
        %v311 = vsel %vm310, %v303, %v309
        %313 = vst [vmem:[#allocation3] sm:$0x33] %v311
        %v314 = vld [vmem:[#allocation2] sm:$0x3f]
        %v316 = vcombine.low %v314, %v314
        %v318 = vunpack.c.l.s4 1983009808
        %v319 = vunpack.c.0.s8 %v318
        %v320 = vlaneseq
        %v321 = vshrl.u32 %v320, 7
        %v322 = vsub.s32 %v319, %v321
        %v323 = vrot.slane %v316, %v322
        %v325 = vunpack.c.l.s4 1983009808
        %v326 = vunpack.c.0.s8 %v325
        %v327 = vlaneseq
        %v328 = vshrl.u32 %v327, 7
        %v329 = vsub.s32 %v326, %v328
        %v330 = vrot.slane %v314, %v329
        %331 = vrot.lane.b32.xlu0 %v323, 16
        %v332 = vpop.permute.xlu0 %331
        %333 = vrot.lane.b32.xlu0 %v330, 16
        %v334 = vpop.permute.xlu0 %333
        %v335 = vrot.slane %v332, 4
        %v336 = vrot.slane %v334, 4
        %v337 = vsel %vm308, %v335, %v336
        %vm338 = vcmask 130048
        %v339 = vsel %vm338, %v332, %v337
        %341 = vst [vmem:[#allocation3] sm:$0xcc] %v339
        %v342 = vld [vmem:[#allocation2] sm:$0x3f]
        %v345 = vcombine.low %v240, %v241
        %v347 = vunpack.c.l.s4 1983009808
        %v348 = vunpack.c.0.s8 %v347
        %v349 = vlaneseq
        %v350 = vshrl.u32 %v349, 7
        %v351 = vsub.s32 %v348, %v350
        %v352 = vrot.slane %v345, %v351
        %353 = vrot.lane.b32.xlu0 %v352, 113
        %v354 = vpop.permute.xlu0 %353
        %v355 = vrot.slane %v354, 6
        %vm356 = vcmask 924672
        %v357 = vsel %vm356, %v355, %v354
        %v359 = vmul.bf16 %v342, %v357
        %v361 = vcombine.high %v359, %v359
        %v363 = vunpack.c.l.s4 1983009808
        %v364 = vunpack.c.0.s8 %v363
        %v365 = vlaneseq
        %v366 = vshrl.u32 %v365, 7
        %v367 = vsub.s32 %v364, %v366
        %v368 = vrot.slane %v359, %v367
        %v370 = vunpack.c.l.s4 1983009808
        %v371 = vunpack.c.0.s8 %v370
        %v372 = vlaneseq
        %v373 = vshrl.u32 %v372, 7
        %v374 = vsub.s32 %v371, %v373
        %v375 = vrot.slane %v361, %v374
        %376 = vrot.lane.b32.xlu0 %v368, 15
        %v377 = vpop.permute.xlu0 %376
        %378 = vrot.lane.b32.xlu0 %v375, 15
        %v379 = vpop.permute.xlu0 %378
        %v380 = vrot.slane %v377, 4
        %v381 = vrot.slane %v379, 4
        %v382 = vsel %vm308, %v380, %v381
        %vm383 = vcmask 121856
        %v384 = vsel %vm383, %v377, %v382
        %386 = vst [vmem:[#allocation3 + $0x8] sm:$0x33] %v384
        %v387 = vld [vmem:[#allocation2] sm:$0x3f]
        %388 = vrot.lane.b32.xlu0 %v278, 127
        %v389 = vpop.permute.xlu0 %388
        %v390 = vrot.slane %v389, 6
        %vm391 = vcmask 1039360
        %v392 = vsel %vm391, %v390, %v389
        %v394 = vmul.bf16 %v387, %v392
        %v396 = vcombine.low %v394, %v394
        %v398 = vunpack.c.l.s4 1983009808
        %v399 = vunpack.c.0.s8 %v398
        %v400 = vlaneseq
        %v401 = vshrl.u32 %v400, 7
        %v402 = vsub.s32 %v399, %v401
        %v403 = vrot.slane %v396, %v402
        %v405 = vunpack.c.l.s4 1983009808
        %v406 = vunpack.c.0.s8 %v405
        %v407 = vlaneseq
        %v408 = vshrl.u32 %v407, 7
        %v409 = vsub.s32 %v406, %v408
        %v410 = vrot.slane %v394, %v409
        %411 = vrot.lane.b32.xlu0 %v403, 1
        %v412 = vpop.permute.xlu0 %411
        %413 = vrot.lane.b32.xlu0 %v410, 1
        %v414 = vpop.permute.xlu0 %413
        %v415 = vrot.slane %v412, 4
        %v416 = vrot.slane %v414, 4
        %v417 = vsel %vm308, %v415, %v416
        %vm418 = vcmask 7168
        %v419 = vsel %vm418, %v412, %v417
        %421 = vst [vmem:[#allocation3 + $0x8] sm:$0xcc] %v419
        %v422 = vld [vmem:[#allocation2 + $0x2] sm:$0xf]
        %v425 = vunpack.c.l.s4 1983009808
        %v426 = vunpack.c.0.s8 %v425
        %v427 = vlaneseq
        %v428 = vshrl.u32 %v427, 7
        %v429 = vsub.s32 %v426, %v428
        %v430 = vrot.slane %v422, %v429
        %432 = vst [vmem:[#allocation3 + $0x10] sm:$0x33] %v430
        %v433 = vld [vmem:[#allocation2 + $0x2] sm:$0x3f]
        %434 = vrot.lane.b32.xlu0 %v352, 1
        %v435 = vpop.permute.xlu0 %434
        %v436 = vrot.slane %v435, 6
        %v437 = vsel %vm418, %v436, %v435
        %v439 = vmul.bf16 %v433, %v437
        %v441 = vcombine.low %v439, %v439
        %v443 = vunpack.c.l.s4 1983009808
        %v444 = vunpack.c.0.s8 %v443
        %v445 = vlaneseq
        %v446 = vshrl.u32 %v445, 7
        %v447 = vsub.s32 %v444, %v446
        %v448 = vrot.slane %v441, %v447
        %v450 = vunpack.c.l.s4 1983009808
        %v451 = vunpack.c.0.s8 %v450
        %v452 = vlaneseq
        %v453 = vshrl.u32 %v452, 7
        %v454 = vsub.s32 %v451, %v453
        %v455 = vrot.slane %v439, %v454
        %456 = vrot.lane.b32.xlu0 %v448, 127
        %v457 = vpop.permute.xlu0 %456
        %458 = vrot.lane.b32.xlu0 %v455, 127
        %v459 = vpop.permute.xlu0 %458
        %v460 = vrot.slane %v457, 4
        %v461 = vrot.slane %v459, 4
        %v462 = vsel %vm308, %v460, %v461
        %v463 = vsel %vm391, %v457, %v462
        %465 = vst [vmem:[#allocation3 + $0x10] sm:$0xcc] %v463
        %v466 = vld [vmem:[#allocation2 + $0x2] sm:$0x3f]
        %467 = vrot.lane.b32.xlu0 %v278, 15
        %v468 = vpop.permute.xlu0 %467
        %v469 = vrot.slane %v468, 6
        %v470 = vsel %vm383, %v469, %v468
        %v472 = vmul.bf16 %v466, %v470
        %v474 = vcombine.high %v472, %v472
        %v476 = vunpack.c.l.s4 1983009808
        %v477 = vunpack.c.0.s8 %v476
        %v478 = vlaneseq
        %v479 = vshrl.u32 %v478, 7
        %v480 = vsub.s32 %v477, %v479
        %v481 = vrot.slane %v472, %v480
        %v483 = vunpack.c.l.s4 1983009808
        %v484 = vunpack.c.0.s8 %v483
        %v485 = vlaneseq
        %v486 = vshrl.u32 %v485, 7
        %v487 = vsub.s32 %v484, %v486
        %v488 = vrot.slane %v474, %v487
        %489 = vrot.lane.b32.xlu0 %v481, 113
        %v490 = vpop.permute.xlu0 %489
        %491 = vrot.lane.b32.xlu0 %v488, 113
        %v492 = vpop.permute.xlu0 %491
        %v493 = vrot.slane %v490, 4
        %v494 = vrot.slane %v492, 4
        %v495 = vsel %vm308, %v493, %v494
        %v496 = vsel %vm356, %v490, %v495
        %498 = vst [vmem:[#allocation3 + $0x18] sm:$0x33] %v496
        %v499 = vld [vmem:[#allocation2 + $0x2] sm:$0x3f]
        %v501 = vcombine.low %v499, %v499
        %v503 = vunpack.c.l.s4 1983009808
        %v504 = vunpack.c.0.s8 %v503
        %v505 = vlaneseq
        %v506 = vshrl.u32 %v505, 7
        %v507 = vsub.s32 %v504, %v506
        %v508 = vrot.slane %v501, %v507
        %v510 = vunpack.c.l.s4 1983009808
        %v511 = vunpack.c.0.s8 %v510
        %v512 = vlaneseq
        %v513 = vshrl.u32 %v512, 7
        %v514 = vsub.s32 %v511, %v513
        %v515 = vrot.slane %v499, %v514
        %516 = vrot.lane.b32.xlu0 %v508, 112
        %v517 = vpop.permute.xlu0 %516
        %518 = vrot.lane.b32.xlu0 %v515, 112
        %v519 = vpop.permute.xlu0 %518
        %v520 = vrot.slane %v517, 4
        %v521 = vrot.slane %v519, 4
        %v522 = vsel %vm308, %v520, %v521
        %vm523 = vcmask 916480
        %v524 = vsel %vm523, %v517, %v522
        %526 = vst [vmem:[#allocation3 + $0x18] sm:$0xcc] %v524
        %v527 = vld [vmem:[#allocation2 + $0x2] sm:$0x3f]
        %528 = vrot.lane.b32.xlu0 %v352, 17
        %v529 = vpop.permute.xlu0 %528
        %v530 = vrot.slane %v529, 6
        %v531 = vsel %vm310, %v530, %v529
        %v533 = vmul.bf16 %v527, %v531
        %v535 = vcombine.high %v533, %v533
        %v537 = vunpack.c.l.s4 1983009808
        %v538 = vunpack.c.0.s8 %v537
        %v539 = vlaneseq
        %v540 = vshrl.u32 %v539, 7
        %v541 = vsub.s32 %v538, %v540
        %v542 = vrot.slane %v533, %v541
        %v544 = vunpack.c.l.s4 1983009808
        %v545 = vunpack.c.0.s8 %v544
        %v546 = vlaneseq
        %v547 = vshrl.u32 %v546, 7
        %v548 = vsub.s32 %v545, %v547
        %v549 = vrot.slane %v535, %v548
        %550 = vrot.lane.b32.xlu0 %v542, 111
        %v551 = vpop.permute.xlu0 %550
        %552 = vrot.lane.b32.xlu0 %v549, 111
        %v553 = vpop.permute.xlu0 %552
        %v554 = vrot.slane %v551, 4
        %v555 = vrot.slane %v553, 4
        %v556 = vsel %vm308, %v554, %v555
        %v557 = vsel %vm282, %v551, %v556
        %559 = vst [vmem:[#allocation3 + $0x20] sm:$0x33] %v557
        %v560 = vld [vmem:[%s1] sm:$0xf]
        %v561 = vld [vmem:[#allocation3] sm:$0xff]
        %v562 = vld [vmem:[#allocation3 + $0x8] sm:$0xff]
        %v563 = vld [vmem:[#allocation3 + $0x10] sm:$0xff]
        %v564 = vld [vmem:[#allocation3 + $0x18] sm:$0xff]
        %v565 = vld [vmem:[#allocation3 + $0x20] sm:$0x33]
        %567 = vset.pattern.permute.xlu0 0
        %568 = vperm.xlu0 %567, %v188
        %v569 = vpop.permute.xlu0 %568
        %v576 = vunpack.c.l.b16 %v561
        %v577 = vunpack.c.h.b16 %v561
        %v578 = vunpack.c.l.b16 %v562
        %v579 = vunpack.c.h.b16 %v562
        %v580 = vunpack.c.l.b16 %v563
        %v581 = vunpack.c.h.b16 %v563
        %v582 = vunpack.c.l.b16 %v564
        %v583 = vunpack.c.h.b16 %v564
        %v584 = vunpack.c.l.b16 %v565
        %v585 = vunpack.c.h.b16 %v565
        %v586 = vpack.c.b16 %v578, %v576
        %v587 = vpack.c.b16 %v579, %v577
        %v588 = vpack.c.b16 %v582, %v580
        %v589 = vpack.c.b16 %v583, %v581
        %v590 = vpack.c.b16 %v584, %v584
        %v591 = vpack.c.b16 %v585, %v585
        %vm596 = vcmask 293888
        %v598 = vsel %vm596, %v560, 0
        %v601 = vsel %vm242, %v590, 0
        %v604 = vsel %vm242, %v591, 0
        %606 = vmatprep.subr.bf16.mxu0 0
        %607 = vmatpush1.bf16.msra.mxu0 0
        %608 = vmatprep.subr.bf16.mxu0 0
        %609 = vmatpush1.bf16.msra.mxu0 0
        %610 = vmatprep.subr.bf16.mxu0 0
        %611 = vmatpush1.bf16.msra.mxu0 0
        %612 = vmatprep.subr.bf16.mxu0 0
        %613 = vmatpush1.bf16.msra.mxu0 0
        %614 = vmatprep.subr.bf16.mxu0 0
        %615 = vmatpush1.bf16.msra.mxu0 0
        %616 = vmatprep.subr.bf16.mxu0 %v604
        %617 = vmatpush1.bf16.msra.mxu0 %v601
        %618 = vmatprep.subr.bf16.mxu0 %v589
        %619 = vmatpush1.bf16.msra.mxu0 %v588
        %620 = vmatprep.subr.bf16.mxu0 %v587
        %621 = vmatpush1.bf16.msra.mxu0 %v586
        %622 = vmatprep.subr.bf16.mxu0 0
        %623 = vmatpush2.bf16.msra.mxu0 0
        %624 = vmatprep.subr.bf16.mxu0 0
        %625 = vmatpush2.bf16.msra.mxu0 0
        %626 = vmatprep.subr.bf16.mxu0 0
        %627 = vmatpush2.bf16.msra.mxu0 0
        %628 = vmatprep.subr.bf16.mxu0 0
        %629 = vmatpush2.bf16.msra.mxu0 0
        %630 = vmatprep.subr.bf16.mxu0 0
        %631 = vmatpush2.bf16.msra.mxu0 0
        %632 = vmatprep.subr.bf16.mxu0 0
        %633 = vmatpush2.bf16.msra.mxu0 0
        %634 = vmatprep.subr.bf16.mxu0 0
        %635 = vmatpush2.bf16.msra.mxu0 0
        %636 = vmatprep.subr.bf16.mxu0 0
        %637 = vmatpush2.bf16.msra.mxu0 0
        %638 = vmatprep.mubr.bf16.mxu0 0
        %639 = vmatmul.mubr.bf16.gmra.mxu0 %v598
        %v640 = vpop.f32.mrf.mxu0
        %v641 = vadd.f32 %v569, %v640
        %v642 = vpop.f32.mrf.mxu0
        %v643 = vadd.f32 %v569, %v642
        %v644 = vpop.f32.mrf.mxu0
        %v645 = vpop.f32.mrf.mxu0
        %646 = vdwg.mxu0
        %v647 = vadd.f32 %v641, %v643
        %648 = vadd.xlane.f32.xlu0 %v647
        %v649 = vpop.xlane.xlu0 %648
        %v650 = vmul.f32 %v649, 0.00390625
        %v651 = vsub.f32 %v641, %v650
        %v652 = vsub.f32 %v643, %v650
        %v653 = vmul.f32 %v651, %v651
        %v654 = vmul.f32 %v652, %v652
        %v655 = vadd.f32 %v653, %v654
        %656 = vadd.xlane.f32.xlu0 %v655
        %v657 = vpop.xlane.xlu0 %656
        %v658 = vmul.f32 %v657, 0.00390625
        %v659 = vadd.f32 %v658, 1e-05
        %v660 = vrsqrt.pop %v659
        %v661 = vmul.f32 %v660, %v188
        %663 = vset.pattern.permute.xlu0 1
        %664 = vperm.xlu0 %663, %v661
        %v665 = vpop.permute.xlu0 %664
        %v667 = vmul.f32 %v651, %v665
        %v668 = vmul.f32 %v652, %v665
        %669 = vset.pattern.permute.xlu0 2
        %670 = vperm.xlu0 %669, %v188
        %v671 = vpop.permute.xlu0 %670
        %v673 = vadd.f32 %v667, %v671
        %v674 = vadd.f32 %v668, %v671
        %vm675 = vcmp.gt.f32.partialorder %v673, 0.0
        %vm676 = vcmp.gt.f32.partialorder %v674, 0.0
        %677 = vset.pattern.permute.xlu0 3
        %678 = vperm.xlu0 %677, %v188
        %v679 = vpop.permute.xlu0 %678
        %v681 = vmul.f32 %v679, %v673
        %v682 = vmul.f32 %v679, %v674
        %v683 = vsel %vm675, %v673, %v681
        %v684 = vsel %vm676, %v674, %v682
        %685 = vst [vmem:[%s186] sm:$0xff] %v683
        %686 = vst [vmem:[%s186 + $0x8] sm:$0xff] %v684
        %s687 = sand.u32 %s96, 1
        %s688 = scalar_lea.sflag [#allocation6], %s687
        %s689 = sand.u32 %s96, 1
        %s690 = smul.addr %s689, 16
        %s691 = scalar_lea.vmem [#allocation7], %s690
        // Predicated region
        $region37: #{tpu_custom_call.1} parent=31 // pred_check
          %p692 = pneg %p106
        $region38: #{tpu_custom_call.1} parent=31 // pred_check_branch
          %694 = sbr.rel (%p692) target = $region40
        $region39: #{tpu_custom_call.1} parent=31 // pred_region
          %s696 = ssub.s32 256, 256
          %697 = vsyncadd %s688, %s696
          %s698 = smul.addr %s20, 2
          %s699 = smul.addr %s698, 128
          %s700 = scalar_lea.hbm %s3, %s699
          %s702 = sshll.u32 %s691, 4
          %s703 = int_to_ptr.vmem [resolvable:$true] %s702
          %705 = dma.vmem_to_hbm [thread:$0]  %s703, 256, %s700, %s688
        $region40: #{tpu_custom_call.1} parent=31 // pred_fallthru
          _
      $region32: #{tpu_custom_call.1} parent=5 // pred_fallthru
        _
      %p706 = scmp.le.s32.totalorder 2, %s15
      // Predicated region
      $region41: #{tpu_custom_call.1} parent=5 // pred_check
        %p707 = pneg %p706
      $region42: #{tpu_custom_call.1} parent=5 // pred_check_branch
        %709 = sbr.rel (%p707) target = $region44
      $region43: #{tpu_custom_call.1} parent=5 // pred_region
        %s710 = ssub.s32 %s15, 2
        // Predicated region
        $region45: #{tpu_custom_call.1} parent=43 // pred_check
          %p711 = pneg %p112
        $region46: #{tpu_custom_call.1} parent=43 // pred_check_branch
          %713 = sbr.rel (%p711) target = $region48
        $region47: #{tpu_custom_call.1} parent=43 // pred_region
          %s714 = sand.u32 %s97, 1
          %s715 = scalar_lea.sflag [#allocation6], %s714
          %s716 = sand.u32 %s97, 1
          %s717 = smul.addr %s716, 16
          %s718 = scalar_lea.vmem [#allocation7], %s717
          %719 = dma.done %s715, 256
        $region48: #{tpu_custom_call.1} parent=43 // pred_fallthru
          _
      $region44: #{tpu_custom_call.1} parent=5 // pred_fallthru
        _
    $region6: #{tpu_custom_call.1} parent=1 // loop_footer
      %s19 = sadd.s32 1, %s15
    $region7: #{tpu_custom_call.1} parent=1 // loop_footer_branch
      %14 = sbr.rel target = $region3
    $region8: #{tpu_custom_call.1} parent=1 // loop_exit
      _
    %720 = vsyncpa [#allocation5], 1
    %s721 = scalar_lea.sflag [#allocation5], 1
    %722 = vsyncpa %s721, 1
    %723 = vsyncpa [#allocation6], 1
    %s724 = scalar_lea.sflag [#allocation6], 1
    %725 = vsyncpa %s724, 1

</llo_original>
